<compile_context>
chip_gen: v6e
topology: v6e:2x2x1
jax: 0.10.0
libtpu: 0.0.40
codegen_flags: <defaults>
</compile_context>

<pallas_src>
import jax
import jax.numpy as jnp
from jax.experimental import pallas as pl
from jax.experimental.pallas import tpu as pltpu

CE_WEIGHT = 10.0
MSE_WEIGHT = 10.0
EPS = 1e-10

_LANE = 128
_SUBLANE = 8
# Per-channel input block budget (f32 sizing).  6 channel streams (3 pred + 3 targ)
# x 2 pipeline buffers x 1 MiB = 12 MiB resident -> fits the default scoped-VMEM
# limit on every generation (v5e 16 MiB, v6e/v7x 32 MiB) with headroom.
_BLOCK_BYTES = 1 * 1024 * 1024
_MIN_GRID_STEPS = 8            # keep DMA overlap + both v7x cores busy ...
_MIN_STEP_BYTES = 512 * 1024   # ... but never shrink steps below this much real data


def _round_up(x, m):
    return ((x + m - 1) // m) * m


def _choose_batch_tile(B):
    # Whole batch per block whenever it fits even at the minimum 128-lane tile
    # (covers every realistic loss batch size; block dim == full dim is always legal).
    if B * _LANE * 4 <= _BLOCK_BYTES:
        return B
    bt = max(_SUBLANE, (_BLOCK_BYTES // (_LANE * 4)) // _SUBLANE * _SUBLANE)
    return min(bt, (B // _SUBLANE) * _SUBLANE)


def _choose_spatial_tile(S, bt, nb):
    # S is a multiple of 128 here.  Pick st | S with st % 128 == 0 (so the aliased
    # per-channel column offsets are block-aligned and there is never a ragged column).
    m = S // _LANE
    cands = sorted(d * _LANE for d in range(1, m + 1) if m % d == 0)
    feasible = [st for st in cands if bt * st * 4 <= _BLOCK_BYTES] or [cands[0]]
    # Prefer the largest tile that still yields a multi-step grid with decently
    # sized steps; otherwise just take the largest feasible tile.
    good = [st for st in feasible
            if nb * (S // st) >= _MIN_GRID_STEPS
            and 6 * bt * st * 4 >= _MIN_STEP_BYTES]
    return max(good) if good else max(feasible)


def _make_kernel(bt, B):
    ragged_rows = (B % bt) != 0

    def kernel(p0_ref, p1_ref, p2_ref, t0_ref, t1_ref, t2_ref, out_ref):
        p0 = p0_ref[...].astype(jnp.float32)
        p1 = p1_ref[...].astype(jnp.float32)
        p2 = p2_ref[...].astype(jnp.float32)
        t0 = t0_ref[...].astype(jnp.float32)
        t1 = t1_ref[...].astype(jnp.float32)
        t2 = t2_ref[...].astype(jnp.float32)

        ce = (-CE_WEIGHT) * t0 * jnp.log(p0 + EPS) \
             - (1.0 - t0) * jnp.log(1.0 - p0 + EPS)
        mse = MSE_WEIGHT * t0 * ((t1 - p1) ** 2 + (t2 - p2) ** 2)
        val = ce + mse

        if ragged_rows:
            # Last batch block extends past B: mask garbage rows (free on the VALU).
            rows = (pl.program_id(0) * bt
                    + jax.lax.broadcasted_iota(jnp.int32, val.shape, 0))
            val = jnp.where(rows < B, val, 0.0)

        # Race-free per-grid-cell partial sum into this cell's own SMEM slot.
        out_ref[0, 0] = jnp.sum(val)

    return kernel


@jax.jit
def metz_loss_2d(prediction, target):
    B, C, H, W = prediction.shape
    assert C >= 3, "MetzLoss2D expects at least 3 channels"
    assert target.shape == prediction.shape
    S = H * W

    if S % _LANE == 0:
        # Fast path: zero HBM relayout.  (B,C,H,W) -> (B, C*S) is a free reshape of a
        # contiguous NCHW buffer; per-channel BlockSpecs alias into it, so channels
        # beyond the first 3 are never read.
        pred2d = prediction.reshape(B, C * S)
        targ2d = target.reshape(B, C * S)
        S_eff = S
    else:
        # Fallback (odd spatial sizes): single lane-padding copy of the 3 used
        # channels.  Pad values make padded cells contribute exactly zero loss
        # (t0 = 0 kills both t0-weighted terms; log(1 - EPS + EPS) == 0 in f32).
        S_eff = _round_up(S, _LANE)
        pad = ((0, 0), (0, 0), (0, S_eff - S))
        pred2d = jnp.pad(prediction[:, :3].reshape(B, 3, S), pad,
                         constant_values=EPS).reshape(B, 3 * S_eff)
        targ2d = jnp.pad(target[:, :3].reshape(B, 3, S), pad,
                         constant_values=0.0).reshape(B, 3 * S_eff)

    bt = _choose_batch_tile(B)
    nb = (B + bt - 1) // bt
    st = _choose_spatial_tile(S_eff, bt, nb)
    ns = S_eff // st
    s_blocks = ns  # per-channel column stride, measured in spatial blocks

    def chan_spec(c):
        return pl.BlockSpec((bt, st), lambda i, j: (i, c * s_blocks + j))

    p_item = jnp.dtype(prediction.dtype).itemsize
    t_item = jnp.dtype(target.dtype).itemsize
    cost = pl.CostEstimate(
        flops=16 * B * S,
        transcendentals=2 * B * S,
        bytes_accessed=3 * B * S * (p_item + t_item) + nb * ns * 4,
    )

    partials = pl.pallas_call(
        _make_kernel(bt, B),
        out_shape=jax.ShapeDtypeStruct((nb, ns), jnp.float32),
        grid_spec=pltpu.PrefetchScalarGridSpec(
            num_scalar_prefetch=0,
            grid=(nb, ns),
            in_specs=[chan_spec(0), chan_spec(1), chan_spec(2),
                      chan_spec(0), chan_spec(1), chan_spec(2)],
            out_specs=pl.BlockSpec((1, 1), lambda i, j: (i, j),
                                   memory_space=pltpu.MemorySpace.SMEM),
        ),
        compiler_params=pltpu.CompilerParams(
            dimension_semantics=("parallel", "parallel"),
        ),
        cost_estimate=cost,
    )(pred2d, pred2d, pred2d, targ2d, targ2d, targ2d)

    # Tiny final reduction and divide by the TRUE batch size in the wrapper.
    return jnp.sum(partials) / jnp.float32(B)


def metz_loss_2d_ref(prediction, target):
    p = prediction.astype(jnp.float32)
    t = target.astype(jnp.float32)
    ce = (-CE_WEIGHT * t[:, 0] * jnp.log(p[:, 0] + EPS)
          - (1.0 - t[:, 0]) * jnp.log(1.0 - p[:, 0] + EPS))
    mse = MSE_WEIGHT * t[:, 0] * ((t[:, 1] - p[:, 1]) ** 2
                                  + (t[:, 2] - p[:, 2]) ** 2)
    return jnp.sum(ce + mse) / prediction.shape[0]


def _make_inputs(key, B, C, H, W):
    k1, k2, k3, k4, k5 = jax.random.split(key, 5)
    pred_prob = jax.random.uniform(k1, (B, 1, H, W), jnp.float32, 0.01, 0.99)
    pred_off = jax.random.uniform(k2, (B, 2, H, W), jnp.float32, 0.0, 1.0)
    pred_extra = jax.random.uniform(k5, (B, C - 3, H, W), jnp.float32, 0.0, 1.0)
    prediction = jnp.concatenate([pred_prob, pred_off, pred_extra], axis=1)

    targ_mask = (jax.random.uniform(k3, (B, 1, H, W)) > 0.7).astype(jnp.float32)
    targ_off = jax.random.uniform(k4, (B, 2, H, W), jnp.float32, 0.0, 1.0)
    targ_extra = jnp.zeros((B, C - 3, H, W), jnp.float32)
    target = jnp.concatenate([targ_mask, targ_off, targ_extra], axis=1)
    return prediction, target


if __name__ == "__main__":
    key = jax.random.PRNGKey(0)
    ka, kb = jax.random.split(key, 2)

    # Fast (zero-copy) path: C > 3 -> extra channel never read; H*W % 128 == 0.
    pred, targ = _make_inputs(ka, B=2, C=4, H=16, W=16)
    loss = jax.block_until_ready(metz_loss_2d(pred, targ))
    ref = jax.block_until_ready(metz_loss_2d_ref(pred, targ))
    assert jnp.allclose(loss, ref, rtol=1e-4, atol=1e-4), (loss, ref)

    # Fallback path: odd spatial size (H*W not a multiple of 128).
    pred2, targ2 = _make_inputs(kb, B=3, C=3, H=10, W=10)
    loss2 = jax.block_until_ready(metz_loss_2d(pred2, targ2))
    ref2 = jax.block_until_ready(metz_loss_2d_ref(pred2, targ2))
    assert jnp.allclose(loss2, ref2, rtol=1e-4, atol=1e-4), (loss2, ref2)

    print("KERNEL_OK")
</pallas_src>

<mosaic_0001>
module attributes {stable_mosaic.version = 11 : i64} {
  func.func @kernel(%arg0: i32, %arg1: i32, %arg2: memref<2x256xf32, #tpu.memory_space<vmem>>, %arg3: memref<2x256xf32, #tpu.memory_space<vmem>>, %arg4: memref<2x256xf32, #tpu.memory_space<vmem>>, %arg5: memref<2x256xf32, #tpu.memory_space<vmem>>, %arg6: memref<2x256xf32, #tpu.memory_space<vmem>>, %arg7: memref<2x256xf32, #tpu.memory_space<vmem>>, %arg8: memref<1x1xf32, #tpu.memory_space<smem>>) attributes {dimension_semantics = [#tpu.dimension_semantics<parallel>, #tpu.dimension_semantics<parallel>], iteration_bounds = array<i64: 1, 1>, scalar_prefetch = 0 : i64, scratch_operands = 0 : i64, tpu.core_type = #tpu.core_type<tc>, window_params = [{transform_indices = @transform_0, window_bounds = array<i64: 2, 256>}, {transform_indices = @transform_1, window_bounds = array<i64: 2, 256>}, {transform_indices = @transform_2, window_bounds = array<i64: 2, 256>}, {transform_indices = @transform_3, window_bounds = array<i64: 2, 256>}, {transform_indices = @transform_4, window_bounds = array<i64: 2, 256>}, {transform_indices = @transform_5, window_bounds = array<i64: 2, 256>}, {transform_indices = @transform_6, window_bounds = array<i64: 1, 1>}]} {
    %c0 = arith.constant 0 : index
    %c0_0 = arith.constant 0 : index
    %0 = vector.load %arg2[%c0, %c0_0] : memref<2x256xf32, #tpu.memory_space<vmem>>, vector<2x256xf32>
    %c0_1 = arith.constant 0 : index
    %c0_2 = arith.constant 0 : index
    %1 = vector.load %arg3[%c0_1, %c0_2] : memref<2x256xf32, #tpu.memory_space<vmem>>, vector<2x256xf32>
    %c0_3 = arith.constant 0 : index
    %c0_4 = arith.constant 0 : index
    %2 = vector.load %arg4[%c0_3, %c0_4] : memref<2x256xf32, #tpu.memory_space<vmem>>, vector<2x256xf32>
    %c0_5 = arith.constant 0 : index
    %c0_6 = arith.constant 0 : index
    %3 = vector.load %arg5[%c0_5, %c0_6] : memref<2x256xf32, #tpu.memory_space<vmem>>, vector<2x256xf32>
    %c0_7 = arith.constant 0 : index
    %c0_8 = arith.constant 0 : index
    %4 = vector.load %arg6[%c0_7, %c0_8] : memref<2x256xf32, #tpu.memory_space<vmem>>, vector<2x256xf32>
    %c0_9 = arith.constant 0 : index
    %c0_10 = arith.constant 0 : index
    %5 = vector.load %arg7[%c0_9, %c0_10] : memref<2x256xf32, #tpu.memory_space<vmem>>, vector<2x256xf32>
    %cst = arith.constant -1.000000e+01 : f32
    %6 = vector.broadcast %cst : f32 to vector<2x256xf32>
    %7 = arith.mulf %6, %3 : vector<2x256xf32>
    %cst_11 = arith.constant 1.000000e-10 : f32
    %8 = vector.broadcast %cst_11 : f32 to vector<2x256xf32>
    %9 = arith.addf %0, %8 : vector<2x256xf32>
    %10 = math.log %9 : vector<2x256xf32>
    %11 = arith.mulf %7, %10 : vector<2x256xf32>
    %cst_12 = arith.constant 1.000000e+00 : f32
    %12 = vector.broadcast %cst_12 : f32 to vector<2x256xf32>
    %13 = arith.subf %12, %3 : vector<2x256xf32>
    %cst_13 = arith.constant 1.000000e+00 : f32
    %14 = vector.broadcast %cst_13 : f32 to vector<2x256xf32>
    %15 = arith.subf %14, %0 : vector<2x256xf32>
    %cst_14 = arith.constant 1.000000e-10 : f32
    %16 = vector.broadcast %cst_14 : f32 to vector<2x256xf32>
    %17 = arith.addf %15, %16 : vector<2x256xf32>
    %18 = math.log %17 : vector<2x256xf32>
    %19 = arith.mulf %13, %18 : vector<2x256xf32>
    %20 = arith.subf %11, %19 : vector<2x256xf32>
    %cst_15 = arith.constant 1.000000e+01 : f32
    %21 = vector.broadcast %cst_15 : f32 to vector<2x256xf32>
    %22 = arith.mulf %21, %3 : vector<2x256xf32>
    %23 = arith.subf %4, %1 : vector<2x256xf32>
    %24 = arith.mulf %23, %23 : vector<2x256xf32>
    %25 = arith.subf %5, %2 : vector<2x256xf32>
    %26 = arith.mulf %25, %25 : vector<2x256xf32>
    %27 = arith.addf %24, %26 : vector<2x256xf32>
    %28 = arith.mulf %22, %27 : vector<2x256xf32>
    %29 = arith.addf %20, %28 : vector<2x256xf32>
    %30 = vector.shape_cast %29 : vector<2x256xf32> to vector<1x2x256xf32>
    %cst_16 = arith.constant dense<0.000000e+00> : vector<1xf32>
    %31 = vector.multi_reduction <add>, %30, %cst_16 [1, 2] : vector<1x2x256xf32> to vector<1xf32>
    %32 = vector.shape_cast %31 : vector<1xf32> to vector<1x1x1xf32>
    %33 = vector.extract %32[0, 0, 0] : f32 from vector<1x1x1xf32>
    %c0_17 = arith.constant 0 : index
    %c0_18 = arith.constant 0 : index
    %34 = memref.load %arg8[%c0_17, %c0_18] : memref<1x1xf32, #tpu.memory_space<smem>>
    memref.store %33, %arg8[%c0_17, %c0_18] : memref<1x1xf32, #tpu.memory_space<smem>>
    return
  }
  func.func @transform_0(%arg0: i32, %arg1: i32) -> (i32, i32) {
    %c0_i32 = arith.constant 0 : i32
    %0 = arith.addi %c0_i32, %arg1 : i32
    %c0_i32_0 = arith.constant 0 : i32
    return %arg0, %0 : i32, i32
  }
  func.func @transform_1(%arg0: i32, %arg1: i32) -> (i32, i32) {
    %c1_i32 = arith.constant 1 : i32
    %0 = arith.addi %c1_i32, %arg1 : i32
    %c0_i32 = arith.constant 0 : i32
    return %arg0, %0 : i32, i32
  }
  func.func @transform_2(%arg0: i32, %arg1: i32) -> (i32, i32) {
    %c2_i32 = arith.constant 2 : i32
    %0 = arith.addi %c2_i32, %arg1 : i32
    %c0_i32 = arith.constant 0 : i32
    return %arg0, %0 : i32, i32
  }
  func.func @transform_3(%arg0: i32, %arg1: i32) -> (i32, i32) {
    %c0_i32 = arith.constant 0 : i32
    %0 = arith.addi %c0_i32, %arg1 : i32
    %c0_i32_0 = arith.constant 0 : i32
    return %arg0, %0 : i32, i32
  }
  func.func @transform_4(%arg0: i32, %arg1: i32) -> (i32, i32) {
    %c1_i32 = arith.constant 1 : i32
    %0 = arith.addi %c1_i32, %arg1 : i32
    %c0_i32 = arith.constant 0 : i32
    return %arg0, %0 : i32, i32
  }
  func.func @transform_5(%arg0: i32, %arg1: i32) -> (i32, i32) {
    %c2_i32 = arith.constant 2 : i32
    %0 = arith.addi %c2_i32, %arg1 : i32
    %c0_i32 = arith.constant 0 : i32
    return %arg0, %0 : i32, i32
  }
  func.func @transform_6(%arg0: i32, %arg1: i32) -> (i32, i32) {
    %c0_i32 = arith.constant 0 : i32
    return %arg0, %arg1 : i32, i32
  }
}

</mosaic_0001>

<llo_original>
// kernel: metz_loss_2d.1
$region0: #{metz_loss_2d.1}
  #allocation0 [shape = 'u32[]', space=smem, size = 0x4, offset = 0x4, fixed_abs, tag = 'smem constant byte address 0x4 - core index']
  #allocation1 [shape = 'u32[144,128]{1,0:T(1,128)}', space=vmem, size = 0x12000, scoped, tag = 'internal scratch']
  %s0 = inlined_call_operand.vmem [shape: f32[2,1024], index: 0, kind: input, shape index: {}, may-alias: {0,1,2}]
  %s1 = inlined_call_operand.vmem [shape: f32[2,1024], index: 1, kind: input, shape index: {}, may-alias: {0,1,2}]
  %s2 = inlined_call_operand.vmem [shape: f32[2,1024], index: 2, kind: input, shape index: {}, may-alias: {0,1,2}]
  %s3 = inlined_call_operand.vmem [shape: f32[2,1024], index: 3, kind: input, shape index: {}, may-alias: {3,4,5}]
  %s4 = inlined_call_operand.vmem [shape: f32[2,1024], index: 4, kind: input, shape index: {}, may-alias: {3,4,5}]
  %s5 = inlined_call_operand.vmem [shape: f32[2,1024], index: 5, kind: input, shape index: {}, may-alias: {3,4,5}]
  %s6 = inlined_call_operand.hbm [shape: f32[1,1], index: 6, kind: output, shape index: {}]
  %s7 = sld [smem:[#allocation0]]
  $region34: #{metz_loss_2d.1} parent=0
    _
  %s9 = ssub.s32 1, %s7
  %s10 = scalar_select 0, %s9, %s7
  $region1: #{metz_loss_2d.1} parent=0
    #allocation2 [shape = 'u8[512]{0}', space=smem, size = 0x200, scoped, tag = 'output window, operand 0, single buffered']
    #allocation3 [shape = 's32[1]{0}', space=sflag, size = 0x4, scoped, tag = 'scoped memory for metz_loss_2d.1']
    %11 = vsyncpa [#allocation3], 0
    // Predicated region
    $region2: #{metz_loss_2d.1} parent=1 // pred_check
      _
    $region3: #{metz_loss_2d.1} parent=1 // pred_check_branch
      %13 = sbr.rel (0) target = $region5
    $region4: #{metz_loss_2d.1} parent=1 // pred_region
      _
    $region5: #{metz_loss_2d.1} parent=1 // pred_fallthru
      _
    // Predicated region
    $region6: #{metz_loss_2d.1} parent=1 // pred_check
      _
    $region7: #{metz_loss_2d.1} parent=1 // pred_check_branch
      %15 = sbr.rel (0) target = $region9
    $region8: #{metz_loss_2d.1} parent=1 // pred_region
      %s16 = sadd.s32 0, 1
      %s17 = smul.u32 2, %s16
      %p18 = scmp.lt.s32.totalorder %s17, 7
      %s19 = scalar_select %p18, %s17, 7
      %s20 = smul.addr %s19, 2
      %s21 = scalar_lea.vmem %s1, %s20
      %s22 = sadd.s32 0, 1
      %s23 = smul.u32 2, %s22
    $region9: #{metz_loss_2d.1} parent=1 // pred_fallthru
      _
    // Predicated region
    $region10: #{metz_loss_2d.1} parent=1 // pred_check
      _
    $region11: #{metz_loss_2d.1} parent=1 // pred_check_branch
      %25 = sbr.rel (0) target = $region13
    $region12: #{metz_loss_2d.1} parent=1 // pred_region
      %s26 = sadd.s32 0, 2
      %s27 = smul.u32 2, %s26
      %p28 = scmp.lt.s32.totalorder %s27, 7
      %s29 = scalar_select %p28, %s27, 7
      %s30 = smul.addr %s29, 2
      %s31 = scalar_lea.vmem %s2, %s30
      %s32 = sadd.s32 0, 2
      %s33 = smul.u32 2, %s32
    $region13: #{metz_loss_2d.1} parent=1 // pred_fallthru
      _
    // Predicated region
    $region14: #{metz_loss_2d.1} parent=1 // pred_check
      _
    $region15: #{metz_loss_2d.1} parent=1 // pred_check_branch
      %35 = sbr.rel (0) target = $region17
    $region16: #{metz_loss_2d.1} parent=1 // pred_region
      _
    $region17: #{metz_loss_2d.1} parent=1 // pred_fallthru
      _
    // Predicated region
    $region18: #{metz_loss_2d.1} parent=1 // pred_check
      _
    $region19: #{metz_loss_2d.1} parent=1 // pred_check_branch
      %37 = sbr.rel (0) target = $region21
    $region20: #{metz_loss_2d.1} parent=1 // pred_region
      %s38 = sadd.s32 0, 1
      %s39 = smul.u32 2, %s38
      %p40 = scmp.lt.s32.totalorder %s39, 7
      %s41 = scalar_select %p40, %s39, 7
      %s42 = smul.addr %s41, 2
      %s43 = scalar_lea.vmem %s4, %s42
      %s44 = sadd.s32 0, 1
      %s45 = smul.u32 2, %s44
    $region21: #{metz_loss_2d.1} parent=1 // pred_fallthru
      _
    // Predicated region
    $region22: #{metz_loss_2d.1} parent=1 // pred_check
      _
    $region23: #{metz_loss_2d.1} parent=1 // pred_check_branch
      %47 = sbr.rel (0) target = $region25
    $region24: #{metz_loss_2d.1} parent=1 // pred_region
      %s48 = sadd.s32 0, 2
      %s49 = smul.u32 2, %s48
      %p50 = scmp.lt.s32.totalorder %s49, 7
      %s51 = scalar_select %p50, %s49, 7
      %s52 = smul.addr %s51, 2
      %s53 = scalar_lea.vmem %s5, %s52
      %s54 = sadd.s32 0, 2
      %s55 = smul.u32 2, %s54
    $region25: #{metz_loss_2d.1} parent=1 // pred_fallthru
      _
    %s56 = sadd.s32 0, 1
    %s57 = smul.u32 2, %s56
    %p58 = scmp.lt.s32.totalorder %s57, 7
    %s59 = scalar_select %p58, %s57, 7
    %s60 = smul.addr %s59, 2
    %s61 = scalar_lea.vmem %s1, %s60
    %s62 = sadd.s32 0, 2
    %s63 = smul.u32 2, %s62
    %p64 = scmp.lt.s32.totalorder %s63, 7
    %s65 = scalar_select %p64, %s63, 7
    %s66 = smul.addr %s65, 2
    %s67 = scalar_lea.vmem %s2, %s66
    %s68 = sadd.s32 0, 1
    %s69 = smul.u32 2, %s68
    %p70 = scmp.lt.s32.totalorder %s69, 7
    %s71 = scalar_select %p70, %s69, 7
    %s72 = smul.addr %s71, 2
    %s73 = scalar_lea.vmem %s4, %s72
    %s74 = sadd.s32 0, 2
    %s75 = smul.u32 2, %s74
    %p76 = scmp.lt.s32.totalorder %s75, 7
    %s77 = scalar_select %p76, %s75, 7
    %s78 = smul.addr %s77, 2
    %s79 = scalar_lea.vmem %s5, %s78
    %s80 = sadd.s32 0, 1
    %s81 = smul.u32 2, %s80
    %p82 = scmp.lt.s32.totalorder %s81, 7
    %s83 = scalar_select %p82, %s81, 7
    %s84 = smul.addr %s83, 2
    %s85 = scalar_lea.vmem %s1, %s84
    %s86 = sadd.s32 0, 1
    %s87 = smul.u32 2, %s86
    %s88 = sadd.s32 0, 2
    %s89 = smul.u32 2, %s88
    %p90 = scmp.lt.s32.totalorder %s89, 7
    %s91 = scalar_select %p90, %s89, 7
    %s92 = smul.addr %s91, 2
    %s93 = scalar_lea.vmem %s2, %s92
    %s94 = sadd.s32 0, 2
    %s95 = smul.u32 2, %s94
    %s96 = sadd.s32 0, 1
    %s97 = smul.u32 2, %s96
    %p98 = scmp.lt.s32.totalorder %s97, 7
    %s99 = scalar_select %p98, %s97, 7
    %s100 = smul.addr %s99, 2
    %s101 = scalar_lea.vmem %s4, %s100
    %s102 = sadd.s32 0, 1
    %s103 = smul.u32 2, %s102
    %s104 = sadd.s32 0, 2
    %s105 = smul.u32 2, %s104
    %p106 = scmp.lt.s32.totalorder %s105, 7
    %s107 = scalar_select %p106, %s105, 7
    %s108 = smul.addr %s107, 2
    %s109 = scalar_lea.vmem %s5, %s108
    %s110 = sadd.s32 0, 2
    %s111 = smul.u32 2, %s110
    %v112 = vld [vmem:[%s0] sm:$0xf]
    %v113 = vld [vmem:[%s85] sm:$0xf]
    %v114 = vld [vmem:[%s93] sm:$0xf]
    %v115 = vld [vmem:[%s3] sm:$0xf]
    %v116 = vld [vmem:[%s101] sm:$0xf]
    %v117 = vld [vmem:[%s109] sm:$0xf]
    %v118 = vmul.f32 %v115, -10.0
    %v119 = vadd.f32 %v112, 1e-10
    %v120 = vlog2.pop %v119
    %v121 = vmul.f32 %v120, 0.6931472
    %v122 = vmul.f32 %v118, %v121
    %v123 = vsub.f32 1.0, %v115
    %v124 = vsub.f32 1.0, %v112
    %v125 = vadd.f32 %v124, 1e-10
    %v126 = vlog2.pop %v125
    %v127 = vmul.f32 %v126, 0.6931472
    %v128 = vmul.f32 %v123, %v127
    %v129 = vsub.f32 %v122, %v128
    %v130 = vmul.f32 %v115, 10.0
    %v131 = vsub.f32 %v116, %v113
    %v132 = vmul.f32 %v131, %v131
    %v133 = vsub.f32 %v117, %v114
    %v134 = vmul.f32 %v133, %v133
    %v135 = vadd.f32 %v132, %v134
    %v136 = vmul.f32 %v130, %v135
    %v137 = vadd.f32 %v129, %v136
    %v140 = vunpack.c.l.s4 1983009808
    %v141 = vunpack.c.0.s8 %v140
    %v142 = vlaneseq
    %v143 = vshrl.u32 %v142, 7
    %v144 = vsub.s32 %v141, %v143
    %v145 = vrot.slane %v137, %v144
    %v146 = vcombine.high %v145, %v145
    %vm149 = vcmask 1041408
    %v150 = vsel %vm149, %v145, 0.0
    %v151 = vsel %vm149, %v146, 0.0
    %v152 = vadd.f32 %v150, %v151
    %153 = vadd.xlane.f32.xlu0 %v152
    %v154 = vpop.xlane.xlu0 %153
    %v155 = vrot.slane %v154, 4
    %v156 = vadd.f32 %v154, %v155
    %v157 = vrot.slane %v156, 2
    %v158 = vadd.f32 %v156, %v157
    %v159 = vrot.slane %v158, 1
    %v160 = vadd.f32 %v158, %v159
    %s161 = vtos %v160
    %s162 = scalar_lea.smem [#allocation2], 0
    %163 = sst [smem:[%s162]] %s161
    // Predicated region
    $region26: #{metz_loss_2d.1} parent=1 // pred_check
      _
    $region27: #{metz_loss_2d.1} parent=1 // pred_check_branch
      %165 = sbr.rel (0) target = $region29
    $region28: #{metz_loss_2d.1} parent=1 // pred_region
      %s167 = ssub.s32 16, 16
      %168 = vsyncadd [#allocation3], %s167
      %171 = dma.smem_to_hbm [#allocation2], 16, %s6, [#allocation3]
    $region29: #{metz_loss_2d.1} parent=1 // pred_fallthru
      _
    // Predicated region
    $region30: #{metz_loss_2d.1} parent=1 // pred_check
      _
    $region31: #{metz_loss_2d.1} parent=1 // pred_check_branch
      %173 = sbr.rel (0) target = $region33
    $region32: #{metz_loss_2d.1} parent=1 // pred_region
      %174 = dma.done [#allocation3], 16
    $region33: #{metz_loss_2d.1} parent=1 // pred_fallthru
      _
    %175 = sfence
    %176 = vsyncpa [#allocation3], 1

</llo_original>
